<compile_context>
chip_gen: v7x
topology: tpu7x:2x2x1
jax: 0.10.0
libtpu: 0.0.40
codegen_flags: <defaults>
</compile_context>

<pallas_src>
import jax
import jax.numpy as jnp
from jax.experimental import pallas as pl
from jax.experimental.pallas import tpu as pltpu


def _margins_kernel(m1_ref, m2_ref, o1_ref, o2_ref):
    # Scalar pass-through entirely in SMEM (no VMEM, no vector units touched).
    o1_ref[0] = m1_ref[0]
    o2_ref[0] = m2_ref[0]


def _margins_pallas(m1, m2):
    m1_1d = m1.reshape((1,))
    m2_1d = m2.reshape((1,))

    o1, o2 = pl.pallas_call(
        _margins_kernel,
        out_shape=(
            jax.ShapeDtypeStruct((1,), m1_1d.dtype),
            jax.ShapeDtypeStruct((1,), m2_1d.dtype),
        ),
        in_specs=[
            pl.BlockSpec(memory_space=pltpu.SMEM),
            pl.BlockSpec(memory_space=pltpu.SMEM),
        ],
        out_specs=(
            pl.BlockSpec(memory_space=pltpu.SMEM),
            pl.BlockSpec(memory_space=pltpu.SMEM),
        ),
        # Honest, purely-advisory scheduler hint: 2 x 4B in + 2 x 4B out.
        cost_estimate=pl.CostEstimate(flops=0, transcendentals=0,
                                      bytes_accessed=16),
    )(m1_1d, m2_1d)

    return o1.reshape(()), o2.reshape(())


@jax.custom_vjp
def learnable_margins_forward(m1, m2):
    """Pallas equivalent of LearnableMargins.forward(): returns (m1, m2)."""
    return _margins_pallas(m1, m2)


def _margins_fwd(m1, m2):
    return _margins_pallas(m1, m2), None


def _margins_bwd(_, cotangents):
    # Forward is the identity on (m1, m2), so the backward is the identity too.
    # Cotangents already carry the primal shape/dtype (no casting in the
    # wrapper), so pass them straight through — keeps the parameters trainable
    # across the custom-call boundary without forcing float32.
    g1, g2 = cotangents
    return g1, g2


learnable_margins_forward.defvjp(_margins_fwd, _margins_bwd)


if __name__ == "__main__":
    # Deterministic parameter initialization matching the module defaults:
    #   m1_init = 0.0, m2_init = 0.6
    # (PRNGKey(0) created for harness consistency; the params are constants
    #  per __init__, so no random draw is needed.)
    _ = jax.random.PRNGKey(0)
    m1_param = jnp.asarray(0.0, dtype=jnp.float32)
    m2_param = jnp.asarray(0.6, dtype=jnp.float32)

    # Forward pass.
    m1, m2 = learnable_margins_forward(m1_param, m2_param)
    jax.block_until_ready((m1, m2))

    assert m1.shape == () and m2.shape == ()
    assert m1.dtype == jnp.float32 and m2.dtype == jnp.float32
    assert abs(float(m1) - 0.0) < 1e-6
    assert abs(float(m2) - 0.6) < 1e-6

    # Gradient check: the parameters remain learnable through the kernel.
    def loss(a, b):
        x, y = learnable_margins_forward(a, b)
        return x * 2.0 + y * 3.0

    g1, g2 = jax.grad(loss, argnums=(0, 1))(m1_param, m2_param)
    jax.block_until_ready((g1, g2))
    assert g1.dtype == m1_param.dtype and g2.dtype == m2_param.dtype
    assert abs(float(g1) - 2.0) < 1e-6
    assert abs(float(g2) - 3.0) < 1e-6

    print("KERNEL_OK")
</pallas_src>

<mosaic_0001>
module attributes {stable_mosaic.version = 11 : i64} {
  func.func @_margins_kernel(%arg0: memref<1xf32, #tpu.memory_space<smem>>, %arg1: memref<1xf32, #tpu.memory_space<smem>>, %arg2: memref<1xf32, #tpu.memory_space<smem>>, %arg3: memref<1xf32, #tpu.memory_space<smem>>) attributes {dimension_semantics = [], scalar_prefetch = 0 : i64, scratch_operands = 0 : i64, tpu.core_type = #tpu.core_type<tc>} {
    %c0 = arith.constant 0 : index
    %0 = memref.load %arg0[%c0] : memref<1xf32, #tpu.memory_space<smem>>
    %c0_0 = arith.constant 0 : index
    %1 = memref.load %arg2[%c0_0] : memref<1xf32, #tpu.memory_space<smem>>
    memref.store %0, %arg2[%c0_0] : memref<1xf32, #tpu.memory_space<smem>>
    %c0_1 = arith.constant 0 : index
    %2 = memref.load %arg1[%c0_1] : memref<1xf32, #tpu.memory_space<smem>>
    %c0_2 = arith.constant 0 : index
    %3 = memref.load %arg3[%c0_2] : memref<1xf32, #tpu.memory_space<smem>>
    memref.store %2, %arg3[%c0_2] : memref<1xf32, #tpu.memory_space<smem>>
    return
  }
}

</mosaic_0001>

<llo_original>
// kernel: tpu_custom_call.1
$region0: #{tpu_custom_call.1}
  #allocation0 [shape = 'u32[]', space=smem, size = 0x4, offset = 0x4, fixed_abs, tag = 'smem constant byte address 0x4 - core index']
  #allocation1 [shape = 'u32[144,128]{1,0:T(1,128)}', space=vmem, size = 0x12000, scoped, tag = 'internal scratch']
  #allocation2 [shape = 'f32[1]{0:T(128)S(6)}', space=smem, size = 0x200, scoped, tag = 'scoped memory for tpu_custom_call.1']
  #allocation3 [shape = 'f32[1]{0:T(128)S(6)}', space=smem, size = 0x200, scoped, tag = 'scoped memory for tpu_custom_call.1']
  %s0 = inlined_call_operand.<no memory space> [shape: f32[1], index: 0, kind: input, shape index: {}]
  %s1 = inlined_call_operand.<no memory space> [shape: f32[1], index: 1, kind: input, shape index: {}]
  %s2 = inlined_call_operand.hbm [shape: f32[1], index: 2, kind: output, shape index: {0}]
  %s3 = inlined_call_operand.hbm [shape: f32[1], index: 3, kind: output, shape index: {1}]
  %4 = xla_tuple %s2, %s3
  %s5 = sld [smem:[#allocation0]]
  $region26: #{tpu_custom_call.1} parent=0
    _
  %s7 = ssub.s32 1, %s5
  %s8 = scalar_select 0, %s7, %s5
  %9 = sst [smem:[#allocation2]] %s0
  %10 = sst [smem:[#allocation3]] %s1
  $region1: #{tpu_custom_call.1} parent=0
    #allocation4 [shape = 'u8[512]{0}', space=smem, size = 0x200, scoped, tag = 'output window, operand 0, single buffered']
    #allocation5 [shape = 's32[1]{0}', space=sflag, size = 0x4, scoped, tag = 'scoped memory for tpu_custom_call.1']
    #allocation6 [shape = 'u8[512]{0}', space=smem, size = 0x200, scoped, tag = 'output window, operand 1, single buffered']
    #allocation7 [shape = 's32[1]{0}', space=sflag, size = 0x4, scoped, tag = 'scoped memory for tpu_custom_call.1']
    %11 = vsyncpa [#allocation5], 0
    %12 = vsyncpa [#allocation7], 0
    // Predicated region
    $region2: #{tpu_custom_call.1} parent=1 // pred_check
      _
    $region3: #{tpu_custom_call.1} parent=1 // pred_check_branch
      %14 = sbr.rel (0) target = $region5
    $region4: #{tpu_custom_call.1} parent=1 // pred_region
      _
    $region5: #{tpu_custom_call.1} parent=1 // pred_fallthru
      _
    // Predicated region
    $region6: #{tpu_custom_call.1} parent=1 // pred_check
      _
    $region7: #{tpu_custom_call.1} parent=1 // pred_check_branch
      %16 = sbr.rel (0) target = $region9
    $region8: #{tpu_custom_call.1} parent=1 // pred_region
      _
    $region9: #{tpu_custom_call.1} parent=1 // pred_fallthru
      _
    %s17 = sld [smem:[#allocation2]]
    %s18 = scalar_lea.smem [#allocation4], 0
    %19 = sst [smem:[%s18]] %s17
    %s20 = sld [smem:[#allocation3]]
    %s21 = scalar_lea.smem [#allocation6], 0
    %22 = sst [smem:[%s21]] %s20
    // Predicated region
    $region10: #{tpu_custom_call.1} parent=1 // pred_check
      _
    $region11: #{tpu_custom_call.1} parent=1 // pred_check_branch
      %24 = sbr.rel (0) target = $region13
    $region12: #{tpu_custom_call.1} parent=1 // pred_region
      %s26 = ssub.s32 16, 16
      %27 = vsyncadd [#allocation5], %s26
      %30 = dma.smem_to_hbm [#allocation4], 16, %s2, [#allocation5]
    $region13: #{tpu_custom_call.1} parent=1 // pred_fallthru
      _
    // Predicated region
    $region14: #{tpu_custom_call.1} parent=1 // pred_check
      _
    $region15: #{tpu_custom_call.1} parent=1 // pred_check_branch
      %32 = sbr.rel (0) target = $region17
    $region16: #{tpu_custom_call.1} parent=1 // pred_region
      %s34 = ssub.s32 16, 16
      %35 = vsyncadd [#allocation7], %s34
      %38 = dma.smem_to_hbm [#allocation6], 16, %s3, [#allocation7]
    $region17: #{tpu_custom_call.1} parent=1 // pred_fallthru
      _
    // Predicated region
    $region18: #{tpu_custom_call.1} parent=1 // pred_check
      _
    $region19: #{tpu_custom_call.1} parent=1 // pred_check_branch
      %40 = sbr.rel (0) target = $region21
    $region20: #{tpu_custom_call.1} parent=1 // pred_region
      %41 = dma.done [#allocation5], 16
    $region21: #{tpu_custom_call.1} parent=1 // pred_fallthru
      _
    // Predicated region
    $region22: #{tpu_custom_call.1} parent=1 // pred_check
      _
    $region23: #{tpu_custom_call.1} parent=1 // pred_check_branch
      %43 = sbr.rel (0) target = $region25
    $region24: #{tpu_custom_call.1} parent=1 // pred_region
      %44 = dma.done [#allocation7], 16
    $region25: #{tpu_custom_call.1} parent=1 // pred_fallthru
      _
    %45 = sfence
    %46 = vsyncpa [#allocation5], 1
    %47 = vsyncpa [#allocation7], 1

</llo_original>
